<compile_context>
chip_gen: v6e
topology: v6e:2x2x1
jax: 0.10.0
libtpu: 0.0.40
codegen_flags: <defaults>
</compile_context>

<pallas_src>
import jax
import jax.numpy as jnp
from jax.experimental import pallas as pl
from jax.experimental.pallas import tpu as pltpu

_LANES = 1024                        # 8 x 128: widest lane-dense last dim
_MIN_SPLIT_BYTES = 256 * 1024        # below this, a single full-extent block
_MAX_BLOCK_BYTES = 8 * 1024 * 1024   # upper bound on one block, any generation


# ---------------------------------------------------------------------------
# Pallas kernel: backward hot path, o = neg_alpha * g  (multiply in f32)
# ---------------------------------------------------------------------------
def _neg_scale_kernel(g_ref, neg_alpha_ref, o_ref):
    na = neg_alpha_ref[0, 0]                       # f32 scalar from SMEM
    g = g_ref[...]
    o_ref[...] = (g.astype(jnp.float32) * na).astype(o_ref.dtype)


# ---------------------------------------------------------------------------
# Tiling policy
# ---------------------------------------------------------------------------
def _vmem_capacity_bytes():
    try:
        info = pltpu.get_tpu_info()
        cap = getattr(info, "vmem_capacity_bytes", None)
        if cap:
            return int(cap)
    except Exception:
        pass
    return 64 * 1024 * 1024            # conservative fallback: v7x per-TC VMEM


def _block_cap_bytes():
    # in + out, double-buffered => ~4 resident copies of one block; keep that
    # comfortably inside the per-generation VMEM (128 MiB v5e/v6e, 64 MiB v7x).
    return max(2 * 1024 * 1024, min(_MAX_BLOCK_BYTES, _vmem_capacity_bytes() // 10))


def _row_granule(itemsize):
    # Packed sub-32-bit dtypes want (16,128)/(32,128) tiles -> unmasked stores.
    if itemsize >= 4:
        return 8
    if itemsize == 2:
        return 16
    return 32


def _pick_tile_r(n_rows, row_bytes, itemsize):
    granule = _row_granule(itemsize)
    total_bytes = n_rows * row_bytes

    # Tiny gradient: single full-extent block (block_shape == array shape).
    if total_bytes <= _MIN_SPLIT_BYTES or n_rows <= 2 * granule:
        return n_rows

    cap_bytes = _block_cap_bytes()
    # Never emit a 1-step grid: split at least 2 ways so v7x megacore uses both
    # TensorCores and input/output DMAs overlap (harmless on v5e/v6e).
    cap = min(max(granule, cap_bytes // row_bytes), -(-n_rows // 2))
    cap = max(granule, (cap // granule) * granule)

    # Prefer an exact divisor of n_rows (no masked tail) but only if it keeps
    # blocks large (>= cap/2); otherwise keep cap and mask the last block.
    lo = max(granule, cap // 2)
    for t in range(cap, lo - 1, -granule):
        if n_rows % t == 0:
            return t
    return cap


# ---------------------------------------------------------------------------
# Streaming wrapper
# ---------------------------------------------------------------------------
def _neg_scale_2d(g2d, neg_alpha_2d):
    R, C = g2d.shape
    itemsize = g2d.dtype.itemsize
    tile_r = _pick_tile_r(R, C * itemsize, itemsize)
    grid = (pl.cdiv(R, tile_r),)
    tile_bytes = tile_r * C * itemsize
    vmem_limit = int(min(48 * 1024 * 1024,
                         max(32 * 1024 * 1024, 4 * tile_bytes + 2 * 1024 * 1024)))
    return pl.pallas_call(
        _neg_scale_kernel,
        out_shape=jax.ShapeDtypeStruct((R, C), g2d.dtype),
        grid=grid,
        in_specs=[
            pl.BlockSpec((tile_r, C), lambda i: (i, 0)),
            pl.BlockSpec(memory_space=pltpu.MemorySpace.SMEM),
        ],
        out_specs=pl.BlockSpec((tile_r, C), lambda i: (i, 0)),
        input_output_aliases={0: 0},   # dead cotangent buffer is reused
        compiler_params=pltpu.CompilerParams(
            dimension_semantics=("parallel",),
            vmem_limit_bytes=vmem_limit,
        ),
        cost_estimate=pl.CostEstimate(
            flops=R * C,
            transcendentals=0,
            bytes_accessed=2 * R * C * itemsize,
        ),
    )(g2d, neg_alpha_2d)


def _lane_width(n):
    for c in (_LANES, 512, 256, 128):
        if n % c == 0:
            return c
    return 0


def _neg_scale(g, alpha):
    """-alpha * g for an arbitrary-shaped gradient via the streaming kernel."""
    n = g.size
    shape = g.shape
    if n == 0:
        return g
    neg_alpha = (-jnp.asarray(alpha, jnp.float32)).reshape(1, 1)

    c = _lane_width(n)
    if c:
        # Fast path: pure (no-copy) reshape to a lane-dense 2-D view.
        out2d = _neg_scale_2d(g.reshape(-1, c), neg_alpha)
        return out2d.reshape(shape)

    # Ragged fallback: pad flat to a 128-lane multiple, slice back after.
    pad = (-n) % 128
    flat = jnp.pad(g.reshape(-1), (0, pad))
    out2d = _neg_scale_2d(flat.reshape(-1, 128), neg_alpha)
    return out2d.reshape(-1)[:n].reshape(shape)


# ---------------------------------------------------------------------------
# GRL: identity forward, -alpha * grad backward
# ---------------------------------------------------------------------------
@jax.custom_vjp
def _grl(x, alpha):
    return x                                    # identity forward, no copy


def _grl_fwd(x, alpha):
    return x, alpha                             # residual: alpha (SMEM scalar later)


def _grl_bwd(alpha, g):
    return _neg_scale(g, alpha), jnp.zeros_like(alpha)


_grl.defvjp(_grl_fwd, _grl_bwd)


def grl(x, alpha=1.0):
    """Gradient reversal: identity forward, -alpha * g backward.

    `alpha` may be a Python number or a (possibly traced) JAX scalar; distinct
    alpha values do NOT force a Pallas recompile (alpha is an SMEM operand).
    """
    return _grl(x, jnp.asarray(alpha, jnp.float32))


def make_grl(alpha=1.0):
    """Build a GRL forward fn with a fixed reversal coefficient `alpha`."""
    alpha = jnp.asarray(alpha, jnp.float32)
    return lambda x: _grl(x, alpha)


# ---------------------------------------------------------------------------
# Demo / self-test
# ---------------------------------------------------------------------------
if __name__ == "__main__":
    key = jax.random.PRNGKey(0)
    B, C, H, W = 2, 4, 16, 16  # NCHW, same convention as the PyTorch module
    x = jax.random.normal(key, (B, C, H, W), dtype=jnp.float32)

    alpha = 1.0
    grl_fn = make_grl(alpha)

    # Forward: identity (no kernel, zero HBM traffic).
    y = grl_fn(x)
    jax.block_until_ready(y)
    assert y.shape == x.shape and y.dtype == x.dtype
    assert jnp.allclose(y, x), "forward is not the identity"

    # Backward (runs the Pallas kernel): grad of sum(grl(x)) == -alpha * ones.
    grad_x = jax.grad(lambda a: jnp.sum(grl_fn(a)))(x)
    jax.block_until_ready(grad_x)
    assert jnp.allclose(grad_x, -alpha * jnp.ones_like(x)), "gradient not reversed"

    # Different alpha reuses the same compiled kernel (alpha is an SMEM scalar).
    grl_half = make_grl(0.5)
    g_half = jax.grad(lambda a: jnp.sum(grl_half(a) * 2.0))(x)
    jax.block_until_ready(g_half)
    assert jnp.allclose(g_half, -1.0 * jnp.ones_like(x)), "scaled gradient wrong"

    # Ragged-size gradient (exercises the padded fallback path).
    x2 = jax.random.normal(jax.random.PRNGKey(1), (3, 5, 7), dtype=jnp.float32)
    g2 = jax.grad(lambda a: jnp.sum(grl_half(a)))(x2)
    jax.block_until_ready(g2)
    assert jnp.allclose(g2, -0.5 * jnp.ones_like(x2)), "ragged gradient wrong"

    # bf16 gradient (packed-dtype tile granule path, f32 multiply inside kernel).
    xb = jax.random.normal(jax.random.PRNGKey(2), (8, 32, 128), dtype=jnp.bfloat16)
    gb = jax.grad(lambda a: jnp.sum(grl_fn(a).astype(jnp.float32)))(xb)
    jax.block_until_ready(gb)
    assert jnp.allclose(gb.astype(jnp.float32),
                        -1.0 * jnp.ones((8, 32, 128), jnp.float32)), "bf16 gradient wrong"

    print("KERNEL_OK")
</pallas_src>

<mosaic_0001>
module attributes {stable_mosaic.version = 11 : i64} {
  func.func @_neg_scale_kernel(%arg0: i32, %arg1: memref<2x1024xf32, #tpu.memory_space<vmem>>, %arg2: memref<1x1xf32, #tpu.memory_space<smem>>, %arg3: memref<2x1024xf32, #tpu.memory_space<vmem>>) attributes {dimension_semantics = [#tpu.dimension_semantics<parallel>], iteration_bounds = array<i64: 1>, scalar_prefetch = 0 : i64, scratch_operands = 0 : i64, tpu.core_type = #tpu.core_type<tc>, window_params = [{transform_indices = @transform_0, window_bounds = array<i64: 2, 1024>}, {transform_indices = @transform_1, window_bounds = array<i64: 1, 1>}, {transform_indices = @transform_2, window_bounds = array<i64: 2, 1024>}]} {
    %c0 = arith.constant 0 : index
    %c0_0 = arith.constant 0 : index
    %0 = memref.load %arg2[%c0, %c0_0] : memref<1x1xf32, #tpu.memory_space<smem>>
    %c0_1 = arith.constant 0 : index
    %c0_2 = arith.constant 0 : index
    %1 = vector.load %arg1[%c0_1, %c0_2] : memref<2x1024xf32, #tpu.memory_space<vmem>>, vector<2x1024xf32>
    %2 = vector.broadcast %0 : f32 to vector<2x1024xf32>
    %3 = arith.mulf %1, %2 : vector<2x1024xf32>
    %c0_3 = arith.constant 0 : index
    %c0_4 = arith.constant 0 : index
    %4 = vector.load %arg3[%c0_3, %c0_4] : memref<2x1024xf32, #tpu.memory_space<vmem>>, vector<2x1024xf32>
    tpu.vector_store %arg3[%c0_3, %c0_4], %3 {strides = array<i32>} : memref<2x1024xf32, #tpu.memory_space<vmem>>, vector<2x1024xf32>,
    return
  }
  func.func @transform_0(%arg0: i32) -> (i32, i32) {
    %c0_i32 = arith.constant 0 : i32
    %c0_i32_0 = arith.constant 0 : i32
    return %arg0, %c0_i32 : i32, i32
  }
  func.func @transform_1(%arg0: i32) -> (i32, i32) {
    %c0_i32 = arith.constant 0 : i32
    %c0_i32_0 = arith.constant 0 : i32
    %c0_i32_1 = arith.constant 0 : i32
    return %c0_i32, %c0_i32_0 : i32, i32
  }
  func.func @transform_2(%arg0: i32) -> (i32, i32) {
    %c0_i32 = arith.constant 0 : i32
    %c0_i32_0 = arith.constant 0 : i32
    return %arg0, %c0_i32 : i32, i32
  }
}

</mosaic_0001>

<llo_original>
// kernel: tpu_custom_call.1
$region0: #{tpu_custom_call.1}
  #allocation0 [shape = 'u32[]', space=smem, size = 0x4, offset = 0x4, fixed_abs, tag = 'smem constant byte address 0x4 - core index']
  #allocation1 [shape = 'u32[144,128]{1,0:T(1,128)}', space=vmem, size = 0x12000, scoped, tag = 'internal scratch']
  #allocation2 [shape = 'f32[1,1]{1,0:T(1,128)S(6)}', space=smem, size = 0x200, scoped, tag = 'scoped memory for tpu_custom_call.1']
  %s0 = inlined_call_operand.hbm [shape: f32[2,1024], index: 0, kind: input, shape index: {}, may-alias: {0,2}]
  %s1 = inlined_call_operand.<no memory space> [shape: f32[1,1], index: 1, kind: input, shape index: {}]
  %s2 = inlined_call_operand.hbm [shape: f32[2,1024], index: 2, kind: output, shape index: {}, may-alias: {0,2}]
  %s3 = sld [smem:[#allocation0]]
  $region22: #{tpu_custom_call.1} parent=0
    _
  %s5 = ssub.s32 1, %s3
  %s6 = scalar_select 0, %s5, %s3
  %7 = sst [smem:[#allocation2]] %s1
  $region1: #{tpu_custom_call.1} parent=0
    #allocation3 [shape = 'u8[8192]{0}', space=vmem, size = 0x2000, scoped, tag = 'input window, operand 0, single buffered']
    #allocation4 [shape = 's32[1]{0}', space=sflag, size = 0x4, scoped, tag = 'scoped memory for tpu_custom_call.1']
    #allocation5 [shape = 's32[1]{0}', space=sflag, size = 0x4, scoped, tag = 'scoped memory for tpu_custom_call.1']
    #allocation6 [shape = 'u8[8192]{0}', space=vmem, size = 0x2000, scoped, tag = 'output window, operand 0, single buffered']
    %8 = vsyncpa [#allocation4], 0
    %9 = vsyncpa [#allocation5], 0
    // Predicated region
    $region2: #{tpu_custom_call.1} parent=1 // pred_check
      _
    $region3: #{tpu_custom_call.1} parent=1 // pred_check_branch
      %11 = sbr.rel (0) target = $region5
    $region4: #{tpu_custom_call.1} parent=1 // pred_region
      %s13 = ssub.s32 256, 256
      %14 = vsyncadd [#allocation4], %s13
      %s16 = sshll.u32 [#allocation3], 4
      %s17 = int_to_ptr.vmem [resolvable:$true] %s16
      %19 = dma.hbm_to_vmem [thread:$0]  %s0, 256, %s17, [#allocation4]
    $region5: #{tpu_custom_call.1} parent=1 // pred_fallthru
      _
    // Predicated region
    $region6: #{tpu_custom_call.1} parent=1 // pred_check
      _
    $region7: #{tpu_custom_call.1} parent=1 // pred_check_branch
      %21 = sbr.rel (0) target = $region9
    $region8: #{tpu_custom_call.1} parent=1 // pred_region
      _
    $region9: #{tpu_custom_call.1} parent=1 // pred_fallthru
      _
    // Predicated region
    $region10: #{tpu_custom_call.1} parent=1 // pred_check
      _
    $region11: #{tpu_custom_call.1} parent=1 // pred_check_branch
      %23 = sbr.rel (0) target = $region13
    $region12: #{tpu_custom_call.1} parent=1 // pred_region
      %24 = dma.done [#allocation4], 256
    $region13: #{tpu_custom_call.1} parent=1 // pred_fallthru
      _
    %s25 = sld [smem:[#allocation2]]
    %v26 = vld [vmem:[#allocation3] sm:$0xff]
    %v27 = vld [vmem:[#allocation3 + $0x8] sm:$0xff]
    %v28 = vstv %s25
    %v29 = vmul.f32 %v26, %v28
    %v30 = vmul.f32 %v27, %v28
    %31 = vst [vmem:[#allocation6] sm:$0xff] %v29
    %32 = vst [vmem:[#allocation6 + $0x8] sm:$0xff] %v30
    // Predicated region
    $region14: #{tpu_custom_call.1} parent=1 // pred_check
      _
    $region15: #{tpu_custom_call.1} parent=1 // pred_check_branch
      %34 = sbr.rel (0) target = $region17
    $region16: #{tpu_custom_call.1} parent=1 // pred_region
      %s36 = ssub.s32 256, 256
      %37 = vsyncadd [#allocation5], %s36
      %s39 = sshll.u32 [#allocation6], 4
      %s40 = int_to_ptr.vmem [resolvable:$true] %s39
      %42 = dma.vmem_to_hbm [thread:$0]  %s40, 256, %s2, [#allocation5]
    $region17: #{tpu_custom_call.1} parent=1 // pred_fallthru
      _
    // Predicated region
    $region18: #{tpu_custom_call.1} parent=1 // pred_check
      _
    $region19: #{tpu_custom_call.1} parent=1 // pred_check_branch
      %44 = sbr.rel (0) target = $region21
    $region20: #{tpu_custom_call.1} parent=1 // pred_region
      %45 = dma.done [#allocation5], 256
    $region21: #{tpu_custom_call.1} parent=1 // pred_fallthru
      _
    %46 = vsyncpa [#allocation4], 1
    %47 = vsyncpa [#allocation5], 1

</llo_original>
